<compile_context>
chip_gen: v7x
topology: tpu7x:2x2x1
jax: 0.10.0
libtpu: 0.0.40
codegen_flags: <defaults>
</compile_context>

<pallas_src>
import functools
import math

import jax
import jax.numpy as jnp
from jax.experimental import pallas as pl
from jax.experimental.pallas import tpu as pltpu


_VMEM_LIMIT_BYTES = 32 * 1024 * 1024     # scoped-VMEM limit requested from Mosaic
_BLOCK_TARGET_BYTES = 8 * 1024 * 1024    # ~8 MiB of input per grid step
_P_BUDGET_BYTES = 2 * 1024 * 1024        # cap for the resident pooling matrix
_MIN_TOTAL_STEPS = 8                     # >= ~4 steps per TensorCore on v7x


def _mxu_dtype(x_dtype):
    # The 0/1 pooling matrix is exact in bf16 -> native bf16 MXU path for bf16
    # inputs; everything else runs the f32 MXU path.
    if jnp.dtype(x_dtype) == jnp.dtype(jnp.bfloat16):
        return jnp.bfloat16
    return jnp.float32


def _row_unit(itemsize):
    # Packed sublanes per row-group for this dtype (8 f32, 16 bf16, 32 int8).
    return max(8, 32 // max(1, itemsize))


def _pick_block_rows(total_rows, row_bytes, unit, other_steps, p_bytes):
    """Rows per grid step: a multiple of `unit`, ~_BLOCK_TARGET_BYTES of input,
    and small enough that the whole grid has >= _MIN_TOTAL_STEPS steps
    (megacore sharding + i+1 prefetch) whenever the problem allows it."""
    if total_rows <= unit:
        return max(1, total_rows)
    target = min(_BLOCK_TARGET_BYTES,
                 max(512 * 1024, (_VMEM_LIMIT_BYTES - p_bytes - (4 << 20)) // 3))
    rb = max(unit, (target // max(1, row_bytes)) // unit * unit)
    rb = min(rb, max(unit, total_rows // unit * unit))
    want_row_steps = -(-_MIN_TOTAL_STEPS // max(1, other_steps))   # ceil div
    want_row_steps = min(want_row_steps, max(1, total_rows // unit))
    if want_row_steps > 1:
        rb = min(rb, max(unit, (total_rows // want_row_steps) // unit * unit))
    return rb


def _pick_group(r_out, wo, s, w, p_itemsize):
    """Pooled output rows packed per super-row (grouped layout): the smallest k
    with k*Wo >= 128 that divides the flat output row count and keeps the
    pooling matrix under budget; else the largest divisor below that."""
    k0 = -(-128 // wo)                                   # ceil(128 / Wo)
    per_k2 = s * w * wo * p_itemsize                     # P bytes == per_k2 * k^2
    k_max = max(1, math.isqrt(_P_BUDGET_BYTES // max(1, per_k2)))
    for k in range(k0, min(k_max, r_out) + 1):           # prefer lane-dense output
        if r_out % k == 0:
            return k
    for k in range(min(k0 - 1, r_out, k_max), 0, -1):    # fallback
        if r_out % k == 0:
            return k
    return 1


def _pick_w_tile(wo, s, p_itemsize):
    """Column-tile output width (wide layout): smallest multiple of 128 that
    divides Wo (lane-dense output, shared ~(128*s x 128) pooling tile,
    ~2*128/s MXU flops per input element); else a single full-width tile."""
    for wot in range(128, wo // 2 + 1, 128):
        if wo % wot == 0 and wot * s * wot * p_itemsize <= _P_BUDGET_BYTES:
            return wot
    return wo


def _pool_group_kernel(x_ref, p_ref, o_ref, *, inv_area, mxu_dtype):
    # One MXU matmul pools both the s rows (packed along the super-row lanes)
    # and the s columns of every window; P is 0/1, normalization applied after.
    acc = jnp.dot(x_ref[...].astype(mxu_dtype), p_ref[...],
                  preferred_element_type=jnp.float32)
    o_ref[...] = (acc * inv_area).astype(o_ref.dtype)


def _pool_phase_kernel(x_ref, p_ref, o_ref, *, s, rows_out, inv_area, mxu_dtype):
    # Row (sublane) pooling: s strided reads straight from the VMEM ref
    # (no materialized per-phase copies), accumulated in f32.
    acc = x_ref[pl.ds(0, rows_out, stride=s), :].astype(jnp.float32)
    for di in range(1, s):
        acc = acc + x_ref[pl.ds(di, rows_out, stride=s), :].astype(jnp.float32)
    # Column (lane) pooling on the MXU against the shared block-diagonal tile.
    out = jnp.dot(acc.astype(mxu_dtype), p_ref[...],
                  preferred_element_type=jnp.float32)
    o_ref[...] = (out * inv_area).astype(o_ref.dtype)


def _pool_grouped(x, n, c, hc, wc, ho, wo, s, inv_area):
    """Wo < 128: pack k*s image rows per lane-dense super-row and pool rows +
    columns with one resident block-diagonal matmul."""
    itemsize = jnp.dtype(x.dtype).itemsize
    mxu_dtype = _mxu_dtype(x.dtype)
    p_itemsize = jnp.dtype(mxu_dtype).itemsize

    r_tot, r_out = n * c * hc, n * c * ho
    k = _pick_group(r_out, wo, s, wc, p_itemsize)
    g = k * s                         # image rows per super-row
    r_sup = r_tot // g                # == r_out // k
    wi, wsup_out = g * wc, k * wo     # super-row lane widths (in / out)

    x_flat = x.reshape(r_sup, wi)     # free: contiguous NCHW reshape

    p_bytes = wi * wsup_out * p_itemsize
    rb = _pick_block_rows(r_sup, wi * itemsize, _row_unit(itemsize), 1, p_bytes)
    grid = (pl.cdiv(r_sup, rb),)

    # P[(j*s + di)*Wc + w, j*Wo + wo] = 1 iff w // s == wo   (0/1, exact in bf16).
    rows = jnp.arange(wi)
    cols = jnp.arange(wsup_out)
    p = (((rows[:, None] // (s * wc)) == (cols[None, :] // wo))
         & (((rows[:, None] % wc) // s) == (cols[None, :] % wo))).astype(mxu_dtype)

    out = pl.pallas_call(
        functools.partial(_pool_group_kernel, inv_area=inv_area,
                          mxu_dtype=mxu_dtype),
        out_shape=jax.ShapeDtypeStruct((r_sup, wsup_out), x.dtype),
        grid_spec=pltpu.PrefetchScalarGridSpec(
            num_scalar_prefetch=0,
            grid=grid,
            in_specs=[
                pl.BlockSpec((rb, wi), lambda i: (i, 0)),
                pl.BlockSpec((wi, wsup_out), lambda i: (0, 0)),   # resident
            ],
            out_specs=pl.BlockSpec((rb, wsup_out), lambda i: (i, 0)),
        ),
        compiler_params=pltpu.CompilerParams(
            dimension_semantics=("parallel",),
            vmem_limit_bytes=_VMEM_LIMIT_BYTES,
        ),
        cost_estimate=pl.CostEstimate(
            flops=2 * r_sup * wi * wsup_out,
            transcendentals=0,
            bytes_accessed=(r_tot * wc + r_out * wo) * itemsize + p_bytes,
        ),
    )(x_flat, p)
    return out.reshape(n, c, ho, wo)


def _pool_wide(x, n, c, hc, wc, ho, wo, s, inv_area):
    """Wo >= 128 (or very large factors): tile W with a shared block-diagonal
    column-pooling tile; row pooling via sublane-strided ref reads."""
    itemsize = jnp.dtype(x.dtype).itemsize
    mxu_dtype = _mxu_dtype(x.dtype)
    p_itemsize = jnp.dtype(mxu_dtype).itemsize

    r_tot, r_out = n * c * hc, n * c * ho
    wot = _pick_w_tile(wo, s, p_itemsize)
    wt = wot * s                      # input tile width (divides Wc exactly)
    nt = wo // wot                    # number of column tiles

    x_flat = x.reshape(r_tot, wc)     # free: contiguous NCHW reshape

    p_bytes = wt * wot * p_itemsize
    unit = s * _row_unit(itemsize)
    rb = _pick_block_rows(r_tot, wt * itemsize, unit, nt, p_bytes)
    rows_out = rb // s
    grid = (pl.cdiv(r_tot, rb), nt)

    # Shared tile: P[a, b] = 1 iff a // s == b (identical for every column tile).
    p = ((jnp.arange(wt)[:, None] // s)
         == jnp.arange(wot)[None, :]).astype(mxu_dtype)

    out = pl.pallas_call(
        functools.partial(_pool_phase_kernel, s=s, rows_out=rows_out,
                          inv_area=inv_area, mxu_dtype=mxu_dtype),
        out_shape=jax.ShapeDtypeStruct((r_out, wo), x.dtype),
        grid_spec=pltpu.PrefetchScalarGridSpec(
            num_scalar_prefetch=0,
            grid=grid,
            in_specs=[
                pl.BlockSpec((rb, wt), lambda i, j: (i, j)),
                pl.BlockSpec((wt, wot), lambda i, j: (0, 0)),     # resident
            ],
            out_specs=pl.BlockSpec((rows_out, wot), lambda i, j: (i, j)),
        ),
        compiler_params=pltpu.CompilerParams(
            dimension_semantics=("parallel", "parallel"),
            vmem_limit_bytes=_VMEM_LIMIT_BYTES,
        ),
        cost_estimate=pl.CostEstimate(
            flops=2 * r_out * wc * wot + (s - 1) * r_out * wc,
            transcendentals=0,
            bytes_accessed=(r_tot * wc + r_out * wo) * itemsize + p_bytes,
        ),
    )(x_flat, p)
    return out.reshape(n, c, ho, wo)


def resolution_subsampling(x, subsampling_factor):
    """Forward of ResolutionSubsampling: avg_pool2d(x, kernel=stride=s) on an
    NCHW tensor when s > 1, identity otherwise."""
    s = int(subsampling_factor)
    if s <= 1:
        return x

    n, c, h, w = x.shape
    ho, wo = h // s, w // s
    if ho == 0 or wo == 0:
        return jnp.zeros((n, c, ho, wo), x.dtype)
    hc, wc = ho * s, wo * s
    if (hc, wc) != (h, w):            # avg_pool2d floor (ceil_mode=False) behaviour
        x = x[:, :, :hc, :wc]

    inv_area = 1.0 / float(s * s)
    p_itemsize = jnp.dtype(_mxu_dtype(x.dtype)).itemsize
    if wo < 128 and s * wc * wo * p_itemsize <= _P_BUDGET_BYTES:
        return _pool_grouped(x, n, c, hc, wc, ho, wo, s, inv_area)
    return _pool_wide(x, n, c, hc, wc, ho, wo, s, inv_area)


def _reference(x, s):
    if s <= 1:
        return x
    n, c, h, w = x.shape
    ho, wo = h // s, w // s
    x = x[:, :, : ho * s, : wo * s]
    return x.reshape(n, c, ho, s, wo, s).mean(axis=(3, 5))


if __name__ == "__main__":
    keys = jax.random.split(jax.random.PRNGKey(0), 6)

    # Primary small test (grouped path): (N, C, H, W) = (2, 4, 16, 16), s = 2.
    x = jax.random.normal(keys[0], (2, 4, 16, 16), dtype=jnp.float32)
    out = jax.block_until_ready(resolution_subsampling(x, 2))
    ref = _reference(x, 2)
    assert out.shape == (2, 4, 8, 8)
    assert jnp.allclose(out, ref, atol=1e-5, rtol=1e-5)

    # Larger pooling window, grouped path with a single super-row block.
    x4 = jax.random.normal(keys[1], (1, 3, 24, 32), dtype=jnp.float32)
    out4 = jax.block_until_ready(resolution_subsampling(x4, 4))
    assert jnp.allclose(out4, _reference(x4, 4), atol=1e-5, rtol=1e-5)

    # Wide path (Wo >= 128): column tiling + strided-phase row pooling.
    xw = jax.random.normal(keys[2], (1, 2, 16, 512), dtype=jnp.float32)
    outw = jax.block_until_ready(resolution_subsampling(xw, 2))
    assert jnp.allclose(outw, _reference(xw, 2), atol=1e-5, rtol=1e-5)

    # Grouped path with a partial last row block (garbage rows are discarded).
    xp = jax.random.normal(keys[3], (1, 5, 34, 128), dtype=jnp.float32)
    outp = jax.block_until_ready(resolution_subsampling(xp, 2))
    assert jnp.allclose(outp, _reference(xp, 2), atol=1e-5, rtol=1e-5)

    # Non-divisible spatial dims: cropped (floor) like avg_pool2d.
    xo = jax.random.normal(keys[4], (1, 2, 9, 10), dtype=jnp.float32)
    outo = jax.block_until_ready(resolution_subsampling(xo, 4))
    assert outo.shape == (1, 2, 2, 2)
    assert jnp.allclose(outo, _reference(xo, 4), atol=1e-5, rtol=1e-5)

    # bf16 input exercises the native bf16 MXU operand path.
    xb = jax.random.normal(keys[5], (2, 4, 16, 16), dtype=jnp.float32)
    xb16 = xb.astype(jnp.bfloat16)
    outb = jax.block_until_ready(resolution_subsampling(xb16, 2))
    refb = _reference(xb16.astype(jnp.float32), 2)
    assert jnp.allclose(outb.astype(jnp.float32), refb, atol=2e-2, rtol=2e-2)

    # Factor == 1 identity path.
    outi = jax.block_until_ready(resolution_subsampling(x, 1))
    assert jnp.array_equal(outi, x)

    print("KERNEL_OK")
</pallas_src>

<mosaic_0001>
module attributes {stable_mosaic.version = 11 : i64} {
  func.func @_pool_group_kernel(%arg0: i32, %arg1: memref<4x512xf32, #tpu.memory_space<vmem>>, %arg2: memref<512x128xf32, #tpu.memory_space<vmem>>, %arg3: memref<4x128xf32, #tpu.memory_space<vmem>>) attributes {dimension_semantics = [#tpu.dimension_semantics<parallel>], iteration_bounds = array<i64: 1>, scalar_prefetch = 0 : i64, scratch_operands = 0 : i64, tpu.core_type = #tpu.core_type<tc>, window_params = [{transform_indices = @transform_0, window_bounds = array<i64: 4, 512>}, {pipeline_mode = #tpu.pipeline_mode<synchronous>, transform_indices = @transform_1, window_bounds = array<i64: 512, 128>}, {transform_indices = @transform_2, window_bounds = array<i64: 4, 128>}]} {
    %c0 = arith.constant 0 : index
    %c0_0 = arith.constant 0 : index
    %0 = vector.load %arg1[%c0, %c0_0] : memref<4x512xf32, #tpu.memory_space<vmem>>, vector<4x512xf32>
    %c0_1 = arith.constant 0 : index
    %c0_2 = arith.constant 0 : index
    %1 = vector.load %arg2[%c0_1, %c0_2] : memref<512x128xf32, #tpu.memory_space<vmem>>, vector<512x128xf32>
    %cst = arith.constant dense<0.000000e+00> : vector<4x128xf32>
    %2 = tpu.matmul %0, %1, %cst {dimension_numbers = #tpu.dot_dimension_numbers<[1], [0], [0], [1], [0, 0, 1, 1], [], []>} : vector<4x512xf32>, vector<512x128xf32>, vector<4x128xf32> -> vector<4x128xf32>
    %cst_3 = arith.constant 2.500000e-01 : f32
    %3 = vector.broadcast %cst_3 : f32 to vector<4x128xf32>
    %4 = arith.mulf %2, %3 : vector<4x128xf32>
    %c0_4 = arith.constant 0 : index
    %c0_5 = arith.constant 0 : index
    %5 = vector.load %arg3[%c0_4, %c0_5] : memref<4x128xf32, #tpu.memory_space<vmem>>, vector<4x128xf32>
    tpu.vector_store %arg3[%c0_4, %c0_5], %4 {strides = array<i32>} : memref<4x128xf32, #tpu.memory_space<vmem>>, vector<4x128xf32>,
    return
  }
  func.func @transform_0(%arg0: i32) -> (i32, i32) {
    %c0_i32 = arith.constant 0 : i32
    %c0_i32_0 = arith.constant 0 : i32
    return %arg0, %c0_i32 : i32, i32
  }
  func.func @transform_1(%arg0: i32) -> (i32, i32) {
    %c0_i32 = arith.constant 0 : i32
    %c0_i32_0 = arith.constant 0 : i32
    %c0_i32_1 = arith.constant 0 : i32
    return %c0_i32, %c0_i32_0 : i32, i32
  }
  func.func @transform_2(%arg0: i32) -> (i32, i32) {
    %c0_i32 = arith.constant 0 : i32
    %c0_i32_0 = arith.constant 0 : i32
    return %arg0, %c0_i32 : i32, i32
  }
}

</mosaic_0001>

<llo_original>
// kernel: tpu_custom_call.1
$region0: #{tpu_custom_call.1}
  #allocation0 [shape = 'u32[]', space=smem, size = 0x4, offset = 0x4, fixed_abs, tag = 'smem constant byte address 0x4 - core index']
  #allocation1 [shape = 'u32[144,128]{1,0:T(1,128)}', space=vmem, size = 0x12000, scoped, tag = 'internal scratch']
  %s0 = inlined_call_operand.hbm [shape: f32[4,512], index: 0, kind: input, shape index: {}]
  %s1 = inlined_call_operand.hbm [shape: f32[512,128], index: 1, kind: input, shape index: {}]
  %s2 = inlined_call_operand.hbm [shape: f32[4,128], index: 2, kind: output, shape index: {}]
  %s3 = sld [smem:[#allocation0]]
  $region26: #{tpu_custom_call.1} parent=0
    _
  %s5 = ssub.s32 1, %s3
  %s6 = scalar_select 0, %s5, %s3
  $region1: #{tpu_custom_call.1} parent=0
    #allocation2 [shape = 'u8[8192]{0}', space=vmem, size = 0x2000, scoped, tag = 'input window, operand 0, single buffered']
    #allocation3 [shape = 's32[1]{0}', space=sflag, size = 0x4, scoped, tag = 'scoped memory for tpu_custom_call.1']
    #allocation4 [shape = 's32[1]{0}', space=sflag, size = 0x4, scoped, tag = 'scoped memory for tpu_custom_call.1']
    #allocation5 [shape = 'u8[262144]{0}', space=vmem, size = 0x40000, scoped, tag = 'input window, operand 1, single buffered']
    #allocation6 [shape = 's32[1]{0}', space=sflag, size = 0x4, scoped, tag = 'scoped memory for tpu_custom_call.1']
    #allocation7 [shape = 'u8[2048]{0}', space=vmem, size = 0x800, scoped, tag = 'output window, operand 0, single buffered']
    %7 = vsyncpa [#allocation3], 0
    %8 = vsyncpa [#allocation6], 0
    %9 = vsyncpa [#allocation4], 0
    // Predicated region
    $region2: #{tpu_custom_call.1} parent=1 // pred_check
      _
    $region3: #{tpu_custom_call.1} parent=1 // pred_check_branch
      %11 = sbr.rel (0) target = $region5
    $region4: #{tpu_custom_call.1} parent=1 // pred_region
      %s13 = ssub.s32 256, 256
      %14 = vsyncadd [#allocation3], %s13
      %s16 = sshll.u32 [#allocation2], 4
      %s17 = int_to_ptr.vmem [resolvable:$true] %s16
      %19 = dma.hbm_to_vmem [thread:$0]  %s0, 256, %s17, [#allocation3]
    $region5: #{tpu_custom_call.1} parent=1 // pred_fallthru
      _
    // Predicated region
    $region6: #{tpu_custom_call.1} parent=1 // pred_check
      _
    $region7: #{tpu_custom_call.1} parent=1 // pred_check_branch
      %21 = sbr.rel (0) target = $region9
    $region8: #{tpu_custom_call.1} parent=1 // pred_region
      %s23 = ssub.s32 8192, 8192
      %24 = vsyncadd [#allocation6], %s23
      %s25 = sshll.u32 [#allocation5], 4
      %s26 = int_to_ptr.vmem [resolvable:$true] %s25
      %31 = dma.hbm_to_vmem [thread:$0]  %s1, 8192, %s26, [#allocation6], 128, 128, 8
    $region9: #{tpu_custom_call.1} parent=1 // pred_fallthru
      _
    // Predicated region
    $region10: #{tpu_custom_call.1} parent=1 // pred_check
      _
    $region11: #{tpu_custom_call.1} parent=1 // pred_check_branch
      %33 = sbr.rel (0) target = $region13
    $region12: #{tpu_custom_call.1} parent=1 // pred_region
      %34 = dma.done [#allocation3], 256
    $region13: #{tpu_custom_call.1} parent=1 // pred_fallthru
      _
    // Predicated region
    $region14: #{tpu_custom_call.1} parent=1 // pred_check
      _
    $region15: #{tpu_custom_call.1} parent=1 // pred_check_branch
      %36 = sbr.rel (0) target = $region17
    $region16: #{tpu_custom_call.1} parent=1 // pred_region
      %37 = dma.done [#allocation6], 8192
    $region17: #{tpu_custom_call.1} parent=1 // pred_fallthru
      _
    %v38 = vld [vmem:[#allocation2] sm:$0xff]
    %v39 = vld [vmem:[#allocation2 + $0x8] sm:$0xff]
    %v40 = vld [vmem:[#allocation5] sm:$0xff]
    %v41 = vld [vmem:[#allocation5 + $0x8] sm:$0xff]
    %v42 = vld [vmem:[#allocation5 + $0x10] sm:$0xff]
    %v43 = vld [vmem:[#allocation5 + $0x18] sm:$0xff]
    %v44 = vld [vmem:[#allocation5 + $0x20] sm:$0xff]
    %v45 = vld [vmem:[#allocation5 + $0x28] sm:$0xff]
    %v46 = vld [vmem:[#allocation5 + $0x30] sm:$0xff]
    %v47 = vld [vmem:[#allocation5 + $0x38] sm:$0xff]
    %v48 = vld [vmem:[#allocation5 + $0x40] sm:$0xff]
    %v49 = vld [vmem:[#allocation5 + $0x48] sm:$0xff]
    %v50 = vld [vmem:[#allocation5 + $0x50] sm:$0xff]
    %v51 = vld [vmem:[#allocation5 + $0x58] sm:$0xff]
    %v52 = vld [vmem:[#allocation5 + $0x60] sm:$0xff]
    %v53 = vld [vmem:[#allocation5 + $0x68] sm:$0xff]
    %v54 = vld [vmem:[#allocation5 + $0x70] sm:$0xff]
    %v55 = vld [vmem:[#allocation5 + $0x78] sm:$0xff]
    %v56 = vld [vmem:[#allocation5 + $0x80] sm:$0xff]
    %v57 = vld [vmem:[#allocation5 + $0x88] sm:$0xff]
    %v58 = vld [vmem:[#allocation5 + $0x90] sm:$0xff]
    %v59 = vld [vmem:[#allocation5 + $0x98] sm:$0xff]
    %v60 = vld [vmem:[#allocation5 + $0xa0] sm:$0xff]
    %v61 = vld [vmem:[#allocation5 + $0xa8] sm:$0xff]
    %v62 = vld [vmem:[#allocation5 + $0xb0] sm:$0xff]
    %v63 = vld [vmem:[#allocation5 + $0xb8] sm:$0xff]
    %v64 = vld [vmem:[#allocation5 + $0xc0] sm:$0xff]
    %v65 = vld [vmem:[#allocation5 + $0xc8] sm:$0xff]
    %v66 = vld [vmem:[#allocation5 + $0xd0] sm:$0xff]
    %v67 = vld [vmem:[#allocation5 + $0xd8] sm:$0xff]
    %v68 = vld [vmem:[#allocation5 + $0xe0] sm:$0xff]
    %v69 = vld [vmem:[#allocation5 + $0xe8] sm:$0xff]
    %v70 = vld [vmem:[#allocation5 + $0xf0] sm:$0xff]
    %v71 = vld [vmem:[#allocation5 + $0xf8] sm:$0xff]
    %v72 = vld [vmem:[#allocation5 + $0x100] sm:$0xff]
    %v73 = vld [vmem:[#allocation5 + $0x108] sm:$0xff]
    %v74 = vld [vmem:[#allocation5 + $0x110] sm:$0xff]
    %v75 = vld [vmem:[#allocation5 + $0x118] sm:$0xff]
    %v76 = vld [vmem:[#allocation5 + $0x120] sm:$0xff]
    %v77 = vld [vmem:[#allocation5 + $0x128] sm:$0xff]
    %v78 = vld [vmem:[#allocation5 + $0x130] sm:$0xff]
    %v79 = vld [vmem:[#allocation5 + $0x138] sm:$0xff]
    %v80 = vld [vmem:[#allocation5 + $0x140] sm:$0xff]
    %v81 = vld [vmem:[#allocation5 + $0x148] sm:$0xff]
    %v82 = vld [vmem:[#allocation5 + $0x150] sm:$0xff]
    %v83 = vld [vmem:[#allocation5 + $0x158] sm:$0xff]
    %v84 = vld [vmem:[#allocation5 + $0x160] sm:$0xff]
    %v85 = vld [vmem:[#allocation5 + $0x168] sm:$0xff]
    %v86 = vld [vmem:[#allocation5 + $0x170] sm:$0xff]
    %v87 = vld [vmem:[#allocation5 + $0x178] sm:$0xff]
    %v88 = vld [vmem:[#allocation5 + $0x180] sm:$0xff]
    %v89 = vld [vmem:[#allocation5 + $0x188] sm:$0xff]
    %v90 = vld [vmem:[#allocation5 + $0x190] sm:$0xff]
    %v91 = vld [vmem:[#allocation5 + $0x198] sm:$0xff]
    %v92 = vld [vmem:[#allocation5 + $0x1a0] sm:$0xff]
    %v93 = vld [vmem:[#allocation5 + $0x1a8] sm:$0xff]
    %v94 = vld [vmem:[#allocation5 + $0x1b0] sm:$0xff]
    %v95 = vld [vmem:[#allocation5 + $0x1b8] sm:$0xff]
    %v96 = vld [vmem:[#allocation5 + $0x1c0] sm:$0xff]
    %v97 = vld [vmem:[#allocation5 + $0x1c8] sm:$0xff]
    %v98 = vld [vmem:[#allocation5 + $0x1d0] sm:$0xff]
    %v99 = vld [vmem:[#allocation5 + $0x1d8] sm:$0xff]
    %v100 = vld [vmem:[#allocation5 + $0x1e0] sm:$0xff]
    %v101 = vld [vmem:[#allocation5 + $0x1e8] sm:$0xff]
    %v102 = vld [vmem:[#allocation5 + $0x1f0] sm:$0xff]
    %v103 = vld [vmem:[#allocation5 + $0x1f8] sm:$0xff]
    %v106 = vcombine.high %v38, %v38
    %v107 = vcombine.high %v39, %v39
    %110 = vmatprep.subr.mxu0 0.0
    %111 = vmatpush1.msra.mxu0 %v40
    %112 = vmatprep.subr.mxu0 0.0
    %113 = vmatpush1.msra.mxu0 %v41
    %114 = vmatprep.subr.mxu0 0.0
    %115 = vmatpush1.msra.mxu0 %v42
    %116 = vmatprep.subr.mxu0 0.0
    %117 = vmatpush1.msra.mxu0 %v43
    %118 = vmatprep.subr.mxu0 0.0
    %119 = vmatpush1.msra.mxu0 %v44
    %120 = vmatprep.subr.mxu0 0.0
    %121 = vmatpush1.msra.mxu0 %v45
    %122 = vmatprep.subr.mxu0 0.0
    %123 = vmatpush1.msra.mxu0 %v46
    %124 = vmatprep.subr.mxu0 0.0
    %125 = vmatpush1.msra.mxu0 %v47
    %126 = vmatprep.subr.mxu0 0.0
    %127 = vmatpush1.msra.mxu0 %v48
    %128 = vmatprep.subr.mxu0 0.0
    %129 = vmatpush1.msra.mxu0 %v49
    %130 = vmatprep.subr.mxu0 0.0
    %131 = vmatpush1.msra.mxu0 %v50
    %132 = vmatprep.subr.mxu0 0.0
    %133 = vmatpush1.msra.mxu0 %v51
    %134 = vmatprep.subr.mxu0 0.0
    %135 = vmatpush1.msra.mxu0 %v52
    %136 = vmatprep.subr.mxu0 0.0
    %137 = vmatpush1.msra.mxu0 %v53
    %138 = vmatprep.subr.mxu0 0.0
    %139 = vmatpush1.msra.mxu0 %v54
    %140 = vmatprep.subr.mxu0 0.0
    %141 = vmatpush1.msra.mxu0 %v55
    %142 = vmatprep.subr.mxu0 0.0
    %143 = vmatpush1.msra.mxu0 %v56
    %144 = vmatprep.subr.mxu0 0.0
    %145 = vmatpush1.msra.mxu0 %v57
    %146 = vmatprep.subr.mxu0 0.0
    %147 = vmatpush1.msra.mxu0 %v58
    %148 = vmatprep.subr.mxu0 0.0
    %149 = vmatpush1.msra.mxu0 %v59
    %150 = vmatprep.subr.mxu0 0.0
    %151 = vmatpush1.msra.mxu0 %v60
    %152 = vmatprep.subr.mxu0 0.0
    %153 = vmatpush1.msra.mxu0 %v61
    %154 = vmatprep.subr.mxu0 0.0
    %155 = vmatpush1.msra.mxu0 %v62
    %156 = vmatprep.subr.mxu0 0.0
    %157 = vmatpush1.msra.mxu0 %v63
    %158 = vmatprep.subr.mxu0 0.0
    %159 = vmatpush1.msra.mxu0 %v64
    %160 = vmatprep.subr.mxu0 0.0
    %161 = vmatpush1.msra.mxu0 %v65
    %162 = vmatprep.subr.mxu0 0.0
    %163 = vmatpush1.msra.mxu0 %v66
    %164 = vmatprep.subr.mxu0 0.0
    %165 = vmatpush1.msra.mxu0 %v67
    %166 = vmatprep.subr.mxu0 0.0
    %167 = vmatpush1.msra.mxu0 %v68
    %168 = vmatprep.subr.mxu0 0.0
    %169 = vmatpush1.msra.mxu0 %v69
    %170 = vmatprep.subr.mxu0 0.0
    %171 = vmatpush1.msra.mxu0 %v70
    %172 = vmatprep.subr.mxu0 0.0
    %173 = vmatpush1.msra.mxu0 %v71
    %174 = vmatprep.mubr.f32.mxu0 %v106
    %175 = vmatmul.mubr.f32.gmra.mrb[0].mxu0 %v38
    %v176 = vpop.f32.mrb[0].mxu0
    %v177 = vadd.f32 0.0, %v176
    %v178 = vpop.f32.mrb[0].mxu0
    %179 = vdwg.mxu0
    %180 = vmatprep.subr.mxu0 0.0
    %181 = vmatpush1.msra.mxu0 %v72
    %182 = vmatprep.subr.mxu0 0.0
    %183 = vmatpush1.msra.mxu0 %v73
    %184 = vmatprep.subr.mxu0 0.0
    %185 = vmatpush1.msra.mxu0 %v74
    %186 = vmatprep.subr.mxu0 0.0
    %187 = vmatpush1.msra.mxu0 %v75
    %188 = vmatprep.subr.mxu0 0.0
    %189 = vmatpush1.msra.mxu0 %v76
    %190 = vmatprep.subr.mxu0 0.0
    %191 = vmatpush1.msra.mxu0 %v77
    %192 = vmatprep.subr.mxu0 0.0
    %193 = vmatpush1.msra.mxu0 %v78
    %194 = vmatprep.subr.mxu0 0.0
    %195 = vmatpush1.msra.mxu0 %v79
    %196 = vmatprep.subr.mxu0 0.0
    %197 = vmatpush1.msra.mxu0 %v80
    %198 = vmatprep.subr.mxu0 0.0
    %199 = vmatpush1.msra.mxu0 %v81
    %200 = vmatprep.subr.mxu0 0.0
    %201 = vmatpush1.msra.mxu0 %v82
    %202 = vmatprep.subr.mxu0 0.0
    %203 = vmatpush1.msra.mxu0 %v83
    %204 = vmatprep.subr.mxu0 0.0
    %205 = vmatpush1.msra.mxu0 %v84
    %206 = vmatprep.subr.mxu0 0.0
    %207 = vmatpush1.msra.mxu0 %v85
    %208 = vmatprep.subr.mxu0 0.0
    %209 = vmatpush1.msra.mxu0 %v86
    %210 = vmatprep.subr.mxu0 0.0
    %211 = vmatpush1.msra.mxu0 %v87
    %212 = vmatprep.subr.mxu0 0.0
    %213 = vmatpush1.msra.mxu0 %v88
    %214 = vmatprep.subr.mxu0 0.0
    %215 = vmatpush1.msra.mxu0 %v89
    %216 = vmatprep.subr.mxu0 0.0
    %217 = vmatpush1.msra.mxu0 %v90
    %218 = vmatprep.subr.mxu0 0.0
    %219 = vmatpush1.msra.mxu0 %v91
    %220 = vmatprep.subr.mxu0 0.0
    %221 = vmatpush1.msra.mxu0 %v92
    %222 = vmatprep.subr.mxu0 0.0
    %223 = vmatpush1.msra.mxu0 %v93
    %224 = vmatprep.subr.mxu0 0.0
    %225 = vmatpush1.msra.mxu0 %v94
    %226 = vmatprep.subr.mxu0 0.0
    %227 = vmatpush1.msra.mxu0 %v95
    %228 = vmatprep.subr.mxu0 0.0
    %229 = vmatpush1.msra.mxu0 %v96
    %230 = vmatprep.subr.mxu0 0.0
    %231 = vmatpush1.msra.mxu0 %v97
    %232 = vmatprep.subr.mxu0 0.0
    %233 = vmatpush1.msra.mxu0 %v98
    %234 = vmatprep.subr.mxu0 0.0
    %235 = vmatpush1.msra.mxu0 %v99
    %236 = vmatprep.subr.mxu0 0.0
    %237 = vmatpush1.msra.mxu0 %v100
    %238 = vmatprep.subr.mxu0 0.0
    %239 = vmatpush1.msra.mxu0 %v101
    %240 = vmatprep.subr.mxu0 0.0
    %241 = vmatpush1.msra.mxu0 %v102
    %242 = vmatprep.subr.mxu0 0.0
    %243 = vmatpush1.msra.mxu0 %v103
    %244 = vmatprep.mubr.f32.mxu0 %v107
    %245 = vmatmul.mubr.f32.gmra.mrb[0].mxu0 %v39
    %v246 = vpop.f32.mrb[0].mxu0
    %v247 = vadd.f32 %v177, %v246
    %v248 = vpop.f32.mrb[0].mxu0
    %249 = vdwg.mxu0
    %v250 = vmul.f32 %v247, 0.25
    %251 = vst [vmem:[#allocation7] sm:$0xf] %v250
    // Predicated region
    $region18: #{tpu_custom_call.1} parent=1 // pred_check
      _
    $region19: #{tpu_custom_call.1} parent=1 // pred_check_branch
      %253 = sbr.rel (0) target = $region21
    $region20: #{tpu_custom_call.1} parent=1 // pred_region
      %s255 = ssub.s32 64, 64
      %256 = vsyncadd [#allocation4], %s255
      %s258 = sshll.u32 [#allocation7], 4
      %s259 = int_to_ptr.vmem [resolvable:$true] %s258
      %261 = dma.vmem_to_hbm [thread:$0]  %s259, 64, %s2, [#allocation4]
    $region21: #{tpu_custom_call.1} parent=1 // pred_fallthru
      _
    // Predicated region
    $region22: #{tpu_custom_call.1} parent=1 // pred_check
      _
    $region23: #{tpu_custom_call.1} parent=1 // pred_check_branch
      %263 = sbr.rel (0) target = $region25
    $region24: #{tpu_custom_call.1} parent=1 // pred_region
      %264 = dma.done [#allocation4], 64
    $region25: #{tpu_custom_call.1} parent=1 // pred_fallthru
      _
    %265 = vsyncpa [#allocation3], 1
    %266 = vsyncpa [#allocation6], 1
    %267 = vsyncpa [#allocation4], 1

</llo_original>
